<compile_context>
chip_gen: v6e
topology: v6e:2x2x1
jax: 0.10.0
libtpu: 0.0.40
codegen_flags: <defaults>
</compile_context>

<pallas_src>
import functools

import jax
import jax.numpy as jnp
from jax import lax
from jax.experimental import pallas as pl
from jax.experimental.pallas import tpu as pltpu

# Eval-mode RReLU negative slope: mean of defaults (lower=1/8, upper=1/3).
RRELU_SLOPE = (1.0 / 8.0 + 1.0 / 3.0) / 2.0


def _rrelu(x):
    return jnp.where(x >= 0.0, x, x * RRELU_SLOPE)


def _round_up(x, m):
    return ((x + m - 1) // m) * m


def _cdiv(a, b):
    return (a + b - 1) // b


# ----------------------------------------------------------------------------
# Kernel
# ----------------------------------------------------------------------------
def critic_kernel(
    s_ref, a_ref,               # streamed row tiles: [TM, S] f32, [TM, A] f32
    ws_ref, wa_ref, bf_ref,     # folded first stage: [S,H0] bf16, [A,H0] bf16, [1,H0] f32
    w1_ref, b1_ref,             # fc1: [H0, H1] bf16, [1, H1] f32
    w2_ref, b2_ref,             # fc2: [H1, H2] bf16, [1, H2] f32
    wl_ref, bl_ref,             # logit as a row: [1, H2] f32, [1, 1] f32
    out_ref,                    # [1, TM] f32  (lane-dense)
):
    s = s_ref[...].astype(jnp.bfloat16)
    a = a_ref[...].astype(jnp.bfloat16)

    # fused (critic_first_layer ∘ fc0), split over (state, action), then RReLU.
    z = (jnp.dot(s, ws_ref[...], preferred_element_type=jnp.float32)
         + jnp.dot(a, wa_ref[...], preferred_element_type=jnp.float32)
         + bf_ref[...])
    z = _rrelu(z)

    # fc1 + RReLU
    z = jnp.dot(z.astype(jnp.bfloat16), w1_ref[...],
                preferred_element_type=jnp.float32) + b1_ref[...]
    z = _rrelu(z)

    # fc2 + RReLU
    z = jnp.dot(z.astype(jnp.bfloat16), w2_ref[...],
                preferred_element_type=jnp.float32) + b2_ref[...]
    z = _rrelu(z)

    # logit head (N=1): [1,H2] x [TM,H2]^T -> [1,TM] lane-dense row directly,
    # so the store is an unmasked, lane-dense vst (no [TM,1] masked stores).
    v = lax.dot_general(wl_ref[...], z, (((1,), (1,)), ((), ())),
                        preferred_element_type=jnp.float32)
    out_ref[...] = (v + bl_ref[...]).astype(out_ref.dtype)


# ----------------------------------------------------------------------------
# Parameter construction (torch-like init) and packing (fold + bf16)
# ----------------------------------------------------------------------------
def init_critic_params(key, state_size, action_size, critic_fc_sizes=(256, 128, 64)):
    """Torch-style nn.Linear default init, weights stored as [in, out]."""
    h0, h1, h2 = critic_fc_sizes

    def linear(key, fan_in, fan_out):
        kw, kb = jax.random.split(key)
        bound = 1.0 / jnp.sqrt(jnp.float32(fan_in))
        w = jax.random.uniform(kw, (fan_in, fan_out), jnp.float32, -bound, bound)
        b = jax.random.uniform(kb, (1, fan_out), jnp.float32, -bound, bound)
        return w, b

    keys = jax.random.split(key, 5)
    w1, b1 = linear(keys[0], state_size, h0)
    w0, b0 = linear(keys[1], h0 + action_size, h0)
    wf1, bf1 = linear(keys[2], h0, h1)
    wf2, bf2 = linear(keys[3], h1, h2)
    wl, bl = linear(keys[4], h2, 1)
    return (w1, b1, w0, b0, wf1, bf1, wf2, bf2, wl, bl)


def pack_critic_params(params):
    """Fold the activation-free first layer into fc0 and cast weights to bf16."""
    (w1, b1, w0, b0, wf1, bf1, wf2, bf2, wl, bl) = params
    h0 = w1.shape[1]
    w0h, w0a = w0[:h0, :], w0[h0:, :]
    ws = (w1 @ w0h).astype(jnp.bfloat16)          # [state, H0]
    wa = w0a.astype(jnp.bfloat16)                 # [action, H0]
    bf = (b1 @ w0h + b0).astype(jnp.float32)      # [1, H0]
    return (
        ws, wa, bf,
        wf1.astype(jnp.bfloat16), bf1.astype(jnp.float32),
        wf2.astype(jnp.bfloat16), bf2.astype(jnp.float32),
        wl.T.astype(jnp.float32),                 # [1, H2]
        bl.astype(jnp.float32),                   # [1, 1]
    )


# ----------------------------------------------------------------------------
# Wrapper
# ----------------------------------------------------------------------------
@functools.partial(jax.jit, static_argnames=("tm",))
def critic_forward(state, action, packed_params, *, tm=1024):
    (ws, wa, bf, w1, b1, w2, b2, wl_row, bl) = packed_params
    assert tm % 128 == 0, "tm must be a multiple of 128 (lane-dense output tiles)"

    b, s_dim = state.shape
    a_dim = action.shape[1]
    h0, h1, h2 = ws.shape[1], w1.shape[1], w2.shape[1]

    # Row-tile selection:
    #  * tiny batch -> single tile (out block equals full dims, any width OK)
    #  * moderate batch -> two 128-aligned tiles so both v7x TensorCores work
    #  * large batch -> big tm tiles to amortize the ~0.35 us per-grid-step cost
    if b <= 128:
        tm_eff = max(8, _round_up(b, 8))
    elif b <= 2 * tm:
        tm_eff = _round_up(_cdiv(b, 2), 128)
    else:
        tm_eff = tm
    num_tiles = _cdiv(b, tm_eff)     # partial last tile handled by Pallas masking
    n_out = num_tiles * tm_eff

    row_spec_s = pl.BlockSpec((tm_eff, s_dim), lambda i: (i, 0))
    row_spec_a = pl.BlockSpec((tm_eff, a_dim), lambda i: (i, 0))
    out_spec = pl.BlockSpec((1, tm_eff), lambda i: (0, i))   # lane-dense rows

    def pinned(arr):
        # Constant block index -> weights DMA'd once and stay VMEM-resident.
        return pl.BlockSpec(arr.shape, lambda i: (0, 0))

    weight_args = (ws, wa, bf, w1, b1, w2, b2, wl_row, bl)
    in_specs = [row_spec_s, row_spec_a] + [pinned(w) for w in weight_args]

    weight_bytes = sum(int(w.size) * w.dtype.itemsize for w in weight_args)
    cost = pl.CostEstimate(
        flops=2 * n_out * ((s_dim + a_dim) * h0 + h0 * h1 + h1 * h2 + h2),
        transcendentals=0,
        bytes_accessed=weight_bytes + b * (s_dim + a_dim) * 4 + n_out * 4,
    )

    out = pl.pallas_call(
        critic_kernel,
        out_shape=jax.ShapeDtypeStruct((1, n_out), jnp.float32),
        grid=(num_tiles,),
        in_specs=in_specs,
        out_specs=out_spec,
        compiler_params=pltpu.CompilerParams(
            dimension_semantics=("parallel",)),
        cost_estimate=cost,
    )(state, action, *weight_args)

    return out[0, :b].reshape(b, 1)


# ----------------------------------------------------------------------------
# References
# ----------------------------------------------------------------------------
def critic_reference_packed(state, action, packed_params):
    """Pure-JAX reference using the exact packed (folded, bf16) weights."""
    (ws, wa, bf, w1, b1, w2, b2, wl_row, bl) = packed_params
    z = (jnp.dot(state.astype(jnp.bfloat16), ws, preferred_element_type=jnp.float32)
         + jnp.dot(action.astype(jnp.bfloat16), wa, preferred_element_type=jnp.float32)
         + bf)
    z = _rrelu(z)
    z = jnp.dot(z.astype(jnp.bfloat16), w1, preferred_element_type=jnp.float32) + b1
    z = _rrelu(z)
    z = jnp.dot(z.astype(jnp.bfloat16), w2, preferred_element_type=jnp.float32) + b2
    z = _rrelu(z)
    return jnp.sum(z * wl_row, axis=-1, keepdims=True) + bl


def critic_reference_f32(state, action, params):
    """Pure-JAX f32 reference mirroring the original (unfolded) PyTorch math."""
    (w1, b1, w0, b0, wf1, bf1, wf2, bf2, wl, bl) = params
    h0 = w1.shape[1]
    h = state @ w1 + b1                       # no activation (see note at top)
    z = h @ w0[:h0] + action @ w0[h0:] + b0
    z = jnp.where(z >= 0, z, z * RRELU_SLOPE)
    z = z @ wf1 + bf1
    z = jnp.where(z >= 0, z, z * RRELU_SLOPE)
    z = z @ wf2 + bf2
    z = jnp.where(z >= 0, z, z * RRELU_SLOPE)
    return z @ wl + bl


# ----------------------------------------------------------------------------
if __name__ == "__main__":
    state_size = 24
    action_size = 4
    critic_fc_sizes = (256, 128, 64)

    key = jax.random.PRNGKey(0)
    k_state, k_action, k_params, k_state2, k_action2 = jax.random.split(key, 5)

    params = init_critic_params(k_params, state_size, action_size, critic_fc_sizes)
    packed = pack_critic_params(params)

    # --- small batch (single tile, exact block) ------------------------------
    batch = 8
    state = jax.random.normal(k_state, (batch, state_size), jnp.float32)
    action = jax.random.normal(k_action, (batch, action_size), jnp.float32)

    value = jax.block_until_ready(critic_forward(state, action, packed))
    assert value.shape == (batch, 1), value.shape

    ref_packed = critic_reference_packed(state, action, packed)
    assert jnp.allclose(value, ref_packed, atol=2e-3, rtol=2e-3), (value, ref_packed)

    ref_f32 = critic_reference_f32(state, action, params)
    assert jnp.allclose(value, ref_f32, atol=5e-2, rtol=5e-2), (value, ref_f32)

    # --- larger batch: grid=(2,) with tm_eff=256, ragged last tile -----------
    batch2 = 300
    state2 = jax.random.normal(k_state2, (batch2, state_size), jnp.float32)
    action2 = jax.random.normal(k_action2, (batch2, action_size), jnp.float32)

    value2 = jax.block_until_ready(critic_forward(state2, action2, packed))
    assert value2.shape == (batch2, 1), value2.shape

    ref2 = critic_reference_packed(state2, action2, packed)
    assert jnp.allclose(value2, ref2, atol=2e-3, rtol=2e-3), (value2, ref2)

    print("KERNEL_OK")
</pallas_src>

<mosaic_0001>
module attributes {stable_mosaic.version = 11 : i64} {
  func.func @critic_kernel(%arg0: i32, %arg1: memref<8x24xf32, #tpu.memory_space<vmem>>, %arg2: memref<8x4xf32, #tpu.memory_space<vmem>>, %arg3: memref<24x256xbf16, #tpu.memory_space<vmem>>, %arg4: memref<4x256xbf16, #tpu.memory_space<vmem>>, %arg5: memref<1x256xf32, #tpu.memory_space<vmem>>, %arg6: memref<256x128xbf16, #tpu.memory_space<vmem>>, %arg7: memref<1x128xf32, #tpu.memory_space<vmem>>, %arg8: memref<128x64xbf16, #tpu.memory_space<vmem>>, %arg9: memref<1x64xf32, #tpu.memory_space<vmem>>, %arg10: memref<1x64xf32, #tpu.memory_space<vmem>>, %arg11: memref<1x1xf32, #tpu.memory_space<vmem>>, %arg12: memref<1x8xf32, #tpu.memory_space<vmem>>) attributes {dimension_semantics = [#tpu.dimension_semantics<parallel>], iteration_bounds = array<i64: 1>, scalar_prefetch = 0 : i64, scratch_operands = 0 : i64, tpu.core_type = #tpu.core_type<tc>, window_params = [{transform_indices = @transform_0, window_bounds = array<i64: 8, 24>}, {transform_indices = @transform_1, window_bounds = array<i64: 8, 4>}, {pipeline_mode = #tpu.pipeline_mode<synchronous>, transform_indices = @transform_2, window_bounds = array<i64: 24, 256>}, {pipeline_mode = #tpu.pipeline_mode<synchronous>, transform_indices = @transform_3, window_bounds = array<i64: 4, 256>}, {pipeline_mode = #tpu.pipeline_mode<synchronous>, transform_indices = @transform_4, window_bounds = array<i64: 1, 256>}, {pipeline_mode = #tpu.pipeline_mode<synchronous>, transform_indices = @transform_5, window_bounds = array<i64: 256, 128>}, {pipeline_mode = #tpu.pipeline_mode<synchronous>, transform_indices = @transform_6, window_bounds = array<i64: 1, 128>}, {pipeline_mode = #tpu.pipeline_mode<synchronous>, transform_indices = @transform_7, window_bounds = array<i64: 128, 64>}, {pipeline_mode = #tpu.pipeline_mode<synchronous>, transform_indices = @transform_8, window_bounds = array<i64: 1, 64>}, {pipeline_mode = #tpu.pipeline_mode<synchronous>, transform_indices = @transform_9, window_bounds = array<i64: 1, 64>}, {pipeline_mode = #tpu.pipeline_mode<synchronous>, transform_indices = @transform_10, window_bounds = array<i64: 1, 1>}, {transform_indices = @transform_11, window_bounds = array<i64: 1, 8>}]} {
    %c0 = arith.constant 0 : index
    %c0_0 = arith.constant 0 : index
    %0 = vector.load %arg1[%c0, %c0_0] : memref<8x24xf32, #tpu.memory_space<vmem>>, vector<8x24xf32>
    %1 = arith.truncf %0 : vector<8x24xf32> to vector<8x24xbf16>
    %c0_1 = arith.constant 0 : index
    %c0_2 = arith.constant 0 : index
    %2 = vector.load %arg2[%c0_1, %c0_2] : memref<8x4xf32, #tpu.memory_space<vmem>>, vector<8x4xf32>
    %3 = arith.truncf %2 : vector<8x4xf32> to vector<8x4xbf16>
    %c0_3 = arith.constant 0 : index
    %c0_4 = arith.constant 0 : index
    %4 = vector.load %arg3[%c0_3, %c0_4] : memref<24x256xbf16, #tpu.memory_space<vmem>>, vector<24x256xbf16>
    %cst = arith.constant dense<0.000000e+00> : vector<8x256xf32>
    %5 = tpu.matmul %1, %4, %cst {dimension_numbers = #tpu.dot_dimension_numbers<[1], [0], [0], [1], [0, 0, 1, 1], [], []>} : vector<8x24xbf16>, vector<24x256xbf16>, vector<8x256xf32> -> vector<8x256xf32>
    %c0_5 = arith.constant 0 : index
    %c0_6 = arith.constant 0 : index
    %6 = vector.load %arg4[%c0_5, %c0_6] : memref<4x256xbf16, #tpu.memory_space<vmem>>, vector<4x256xbf16>
    %cst_7 = arith.constant dense<0.000000e+00> : vector<8x256xf32>
    %7 = tpu.matmul %3, %6, %cst_7 {dimension_numbers = #tpu.dot_dimension_numbers<[1], [0], [0], [1], [0, 0, 1, 1], [], []>} : vector<8x4xbf16>, vector<4x256xbf16>, vector<8x256xf32> -> vector<8x256xf32>
    %8 = arith.addf %5, %7 : vector<8x256xf32>
    %c0_8 = arith.constant 0 : index
    %c0_9 = arith.constant 0 : index
    %9 = vector.load %arg5[%c0_8, %c0_9] : memref<1x256xf32, #tpu.memory_space<vmem>>, vector<1x256xf32>
    %10 = vector.broadcast %9 : vector<1x256xf32> to vector<8x256xf32>
    %11 = arith.addf %8, %10 : vector<8x256xf32>
    %cst_10 = arith.constant 0.000000e+00 : f32
    %12 = vector.broadcast %cst_10 : f32 to vector<8x256xf32>
    %13 = arith.cmpf oge, %11, %12 : vector<8x256xf32>
    %cst_11 = arith.constant 0.229166672 : f32
    %14 = vector.broadcast %cst_11 : f32 to vector<8x256xf32>
    %15 = arith.mulf %11, %14 : vector<8x256xf32>
    %16 = arith.select %13, %11, %15 : vector<8x256xi1>, vector<8x256xf32>
    %17 = arith.truncf %16 : vector<8x256xf32> to vector<8x256xbf16>
    %c0_12 = arith.constant 0 : index
    %c0_13 = arith.constant 0 : index
    %18 = vector.load %arg6[%c0_12, %c0_13] : memref<256x128xbf16, #tpu.memory_space<vmem>>, vector<256x128xbf16>
    %cst_14 = arith.constant dense<0.000000e+00> : vector<8x128xf32>
    %19 = tpu.matmul %17, %18, %cst_14 {dimension_numbers = #tpu.dot_dimension_numbers<[1], [0], [0], [1], [0, 0, 1, 1], [], []>} : vector<8x256xbf16>, vector<256x128xbf16>, vector<8x128xf32> -> vector<8x128xf32>
    %c0_15 = arith.constant 0 : index
    %c0_16 = arith.constant 0 : index
    %20 = vector.load %arg7[%c0_15, %c0_16] : memref<1x128xf32, #tpu.memory_space<vmem>>, vector<1x128xf32>
    %21 = vector.broadcast %20 : vector<1x128xf32> to vector<8x128xf32>
    %22 = arith.addf %19, %21 : vector<8x128xf32>
    %cst_17 = arith.constant 0.000000e+00 : f32
    %23 = vector.broadcast %cst_17 : f32 to vector<8x128xf32>
    %24 = arith.cmpf oge, %22, %23 : vector<8x128xf32>
    %cst_18 = arith.constant 0.229166672 : f32
    %25 = vector.broadcast %cst_18 : f32 to vector<8x128xf32>
    %26 = arith.mulf %22, %25 : vector<8x128xf32>
    %27 = arith.select %24, %22, %26 : vector<8x128xi1>, vector<8x128xf32>
    %28 = arith.truncf %27 : vector<8x128xf32> to vector<8x128xbf16>
    %c0_19 = arith.constant 0 : index
    %c0_20 = arith.constant 0 : index
    %29 = vector.load %arg8[%c0_19, %c0_20] : memref<128x64xbf16, #tpu.memory_space<vmem>>, vector<128x64xbf16>
    %cst_21 = arith.constant dense<0.000000e+00> : vector<8x64xf32>
    %30 = tpu.matmul %28, %29, %cst_21 {dimension_numbers = #tpu.dot_dimension_numbers<[1], [0], [0], [1], [0, 0, 1, 1], [], []>} : vector<8x128xbf16>, vector<128x64xbf16>, vector<8x64xf32> -> vector<8x64xf32>
    %c0_22 = arith.constant 0 : index
    %c0_23 = arith.constant 0 : index
    %31 = vector.load %arg9[%c0_22, %c0_23] : memref<1x64xf32, #tpu.memory_space<vmem>>, vector<1x64xf32>
    %32 = vector.broadcast %31 : vector<1x64xf32> to vector<8x64xf32>
    %33 = arith.addf %30, %32 : vector<8x64xf32>
    %cst_24 = arith.constant 0.000000e+00 : f32
    %34 = vector.broadcast %cst_24 : f32 to vector<8x64xf32>
    %35 = arith.cmpf oge, %33, %34 : vector<8x64xf32>
    %cst_25 = arith.constant 0.229166672 : f32
    %36 = vector.broadcast %cst_25 : f32 to vector<8x64xf32>
    %37 = arith.mulf %33, %36 : vector<8x64xf32>
    %38 = arith.select %35, %33, %37 : vector<8x64xi1>, vector<8x64xf32>
    %c0_26 = arith.constant 0 : index
    %c0_27 = arith.constant 0 : index
    %39 = vector.load %arg10[%c0_26, %c0_27] : memref<1x64xf32, #tpu.memory_space<vmem>>, vector<1x64xf32>
    %cst_28 = arith.constant dense<0.000000e+00> : vector<1x8xf32>
    %40 = tpu.matmul %39, %38, %cst_28 {dimension_numbers = #tpu.dot_dimension_numbers<[1], [1], [0], [0], [0, 0, 1, 0], [], []>} : vector<1x64xf32>, vector<8x64xf32>, vector<1x8xf32> -> vector<1x8xf32>
    %c0_29 = arith.constant 0 : index
    %c0_30 = arith.constant 0 : index
    %41 = vector.load %arg11[%c0_29, %c0_30] : memref<1x1xf32, #tpu.memory_space<vmem>>, vector<1x1xf32>
    %42 = vector.broadcast %41 : vector<1x1xf32> to vector<1x8xf32>
    %43 = arith.addf %40, %42 : vector<1x8xf32>
    %c0_31 = arith.constant 0 : index
    %c0_32 = arith.constant 0 : index
    %44 = vector.load %arg12[%c0_31, %c0_32] : memref<1x8xf32, #tpu.memory_space<vmem>>, vector<1x8xf32>
    tpu.vector_store %arg12[%c0_31, %c0_32], %43 {strides = array<i32>} : memref<1x8xf32, #tpu.memory_space<vmem>>, vector<1x8xf32>,
    return
  }
  func.func @transform_0(%arg0: i32) -> (i32, i32) {
    %c0_i32 = arith.constant 0 : i32
    %c0_i32_0 = arith.constant 0 : i32
    return %arg0, %c0_i32 : i32, i32
  }
  func.func @transform_1(%arg0: i32) -> (i32, i32) {
    %c0_i32 = arith.constant 0 : i32
    %c0_i32_0 = arith.constant 0 : i32
    return %arg0, %c0_i32 : i32, i32
  }
  func.func @transform_2(%arg0: i32) -> (i32, i32) {
    %c0_i32 = arith.constant 0 : i32
    %c0_i32_0 = arith.constant 0 : i32
    %c0_i32_1 = arith.constant 0 : i32
    return %c0_i32, %c0_i32_0 : i32, i32
  }
  func.func @transform_3(%arg0: i32) -> (i32, i32) {
    %c0_i32 = arith.constant 0 : i32
    %c0_i32_0 = arith.constant 0 : i32
    %c0_i32_1 = arith.constant 0 : i32
    return %c0_i32, %c0_i32_0 : i32, i32
  }
  func.func @transform_4(%arg0: i32) -> (i32, i32) {
    %c0_i32 = arith.constant 0 : i32
    %c0_i32_0 = arith.constant 0 : i32
    %c0_i32_1 = arith.constant 0 : i32
    return %c0_i32, %c0_i32_0 : i32, i32
  }
  func.func @transform_5(%arg0: i32) -> (i32, i32) {
    %c0_i32 = arith.constant 0 : i32
    %c0_i32_0 = arith.constant 0 : i32
    %c0_i32_1 = arith.constant 0 : i32
    return %c0_i32, %c0_i32_0 : i32, i32
  }
  func.func @transform_6(%arg0: i32) -> (i32, i32) {
    %c0_i32 = arith.constant 0 : i32
    %c0_i32_0 = arith.constant 0 : i32
    %c0_i32_1 = arith.constant 0 : i32
    return %c0_i32, %c0_i32_0 : i32, i32
  }
  func.func @transform_7(%arg0: i32) -> (i32, i32) {
    %c0_i32 = arith.constant 0 : i32
    %c0_i32_0 = arith.constant 0 : i32
    %c0_i32_1 = arith.constant 0 : i32
    return %c0_i32, %c0_i32_0 : i32, i32
  }
  func.func @transform_8(%arg0: i32) -> (i32, i32) {
    %c0_i32 = arith.constant 0 : i32
    %c0_i32_0 = arith.constant 0 : i32
    %c0_i32_1 = arith.constant 0 : i32
    return %c0_i32, %c0_i32_0 : i32, i32
  }
  func.func @transform_9(%arg0: i32) -> (i32, i32) {
    %c0_i32 = arith.constant 0 : i32
    %c0_i32_0 = arith.constant 0 : i32
    %c0_i32_1 = arith.constant 0 : i32
    return %c0_i32, %c0_i32_0 : i32, i32
  }
  func.func @transform_10(%arg0: i32) -> (i32, i32) {
    %c0_i32 = arith.constant 0 : i32
    %c0_i32_0 = arith.constant 0 : i32
    %c0_i32_1 = arith.constant 0 : i32
    return %c0_i32, %c0_i32_0 : i32, i32
  }
  func.func @transform_11(%arg0: i32) -> (i32, i32) {
    %c0_i32 = arith.constant 0 : i32
    %c0_i32_0 = arith.constant 0 : i32
    return %c0_i32, %arg0 : i32, i32
  }
}

</mosaic_0001>

<llo_original>
// kernel: critic_forward.1
$region0: #{critic_forward.1}
  #allocation0 [shape = 'u32[]', space=smem, size = 0x4, offset = 0x4, fixed_abs, tag = 'smem constant byte address 0x4 - core index']
  #allocation1 [shape = 'u32[144,128]{1,0:T(1,128)}', space=vmem, size = 0x12000, scoped, tag = 'internal scratch']
  #allocation2 [shape = 'f32[1,1]{1,0:T(1,128)S(1)}', space=vmem, size = 0x200, scoped, tag = 'scoped memory for critic_forward.1']
  %s0 = inlined_call_operand.vmem [shape: f32[8,24], index: 0, kind: input, shape index: {}]
  %s1 = inlined_call_operand.vmem [shape: f32[8,4], index: 1, kind: input, shape index: {}]
  %s2 = inlined_call_operand.vmem [shape: bf16[24,256], index: 2, kind: input, shape index: {}]
  %s3 = inlined_call_operand.vmem [shape: bf16[4,256], index: 3, kind: input, shape index: {}]
  %s4 = inlined_call_operand.vmem [shape: f32[1,256], index: 4, kind: input, shape index: {}]
  %s5 = inlined_call_operand.hbm [shape: bf16[256,128], index: 5, kind: input, shape index: {}]
  %s6 = inlined_call_operand.vmem [shape: f32[1,128], index: 6, kind: input, shape index: {}]
  %s7 = inlined_call_operand.vmem [shape: bf16[128,64], index: 7, kind: input, shape index: {}]
  %s8 = inlined_call_operand.vmem [shape: f32[1,64], index: 8, kind: input, shape index: {}]
  %s9 = inlined_call_operand.vmem [shape: f32[1,64], index: 9, kind: input, shape index: {}]
  %s10 = inlined_call_operand.<no memory space> [shape: f32[1,1], index: 10, kind: input, shape index: {}]
  %s11 = inlined_call_operand.hbm [shape: f32[1,8], index: 11, kind: output, shape index: {}]
  %s12 = sld [smem:[#allocation0]]
  $region58: #{critic_forward.1} parent=0
    _
  %s14 = ssub.s32 1, %s12
  %s15 = scalar_select 0, %s14, %s12
  %v16 = vstv %s10
  %17 = vst [vmem:[#allocation2] sm:$0x1] %v16
  $region1: #{critic_forward.1} parent=0
    #allocation3 [shape = 'u8[65536]{0}', space=vmem, size = 0x10000, scoped, tag = 'input window, operand 5, single buffered']
    #allocation4 [shape = 's32[1]{0}', space=sflag, size = 0x4, scoped, tag = 'scoped memory for critic_forward.1']
    #allocation5 [shape = 's32[1]{0}', space=sflag, size = 0x4, scoped, tag = 'scoped memory for critic_forward.1']
    #allocation6 [shape = 'u8[512]{0}', space=vmem, size = 0x400, scoped, tag = 'output window, operand 0, single buffered']
    %18 = vsyncpa [#allocation4], 0
    %19 = vsyncpa [#allocation5], 0
    // Predicated region
    $region2: #{critic_forward.1} parent=1 // pred_check
      _
    $region3: #{critic_forward.1} parent=1 // pred_check_branch
      %21 = sbr.rel (0) target = $region5
    $region4: #{critic_forward.1} parent=1 // pred_region
      _
    $region5: #{critic_forward.1} parent=1 // pred_fallthru
      _
    // Predicated region
    $region6: #{critic_forward.1} parent=1 // pred_check
      _
    $region7: #{critic_forward.1} parent=1 // pred_check_branch
      %23 = sbr.rel (0) target = $region9
    $region8: #{critic_forward.1} parent=1 // pred_region
      _
    $region9: #{critic_forward.1} parent=1 // pred_fallthru
      _
    // Predicated region
    $region10: #{critic_forward.1} parent=1 // pred_check
      _
    $region11: #{critic_forward.1} parent=1 // pred_check_branch
      %25 = sbr.rel (0) target = $region13
    $region12: #{critic_forward.1} parent=1 // pred_region
      _
    $region13: #{critic_forward.1} parent=1 // pred_fallthru
      _
    // Predicated region
    $region14: #{critic_forward.1} parent=1 // pred_check
      _
    $region15: #{critic_forward.1} parent=1 // pred_check_branch
      %27 = sbr.rel (0) target = $region17
    $region16: #{critic_forward.1} parent=1 // pred_region
      _
    $region17: #{critic_forward.1} parent=1 // pred_fallthru
      _
    // Predicated region
    $region18: #{critic_forward.1} parent=1 // pred_check
      _
    $region19: #{critic_forward.1} parent=1 // pred_check_branch
      %29 = sbr.rel (0) target = $region21
    $region20: #{critic_forward.1} parent=1 // pred_region
      _
    $region21: #{critic_forward.1} parent=1 // pred_fallthru
      _
    // Predicated region
    $region22: #{critic_forward.1} parent=1 // pred_check
      _
    $region23: #{critic_forward.1} parent=1 // pred_check_branch
      %31 = sbr.rel (0) target = $region25
    $region24: #{critic_forward.1} parent=1 // pred_region
      %s33 = ssub.s32 2048, 2048
      %34 = vsyncadd [#allocation4], %s33
      %s35 = sshll.u32 [#allocation3], 4
      %s36 = int_to_ptr.vmem [resolvable:$true] %s35
      %41 = dma.hbm_to_vmem [thread:$0]  %s5, 2048, %s36, [#allocation4], 64, 64, 4
    $region25: #{critic_forward.1} parent=1 // pred_fallthru
      _
    // Predicated region
    $region26: #{critic_forward.1} parent=1 // pred_check
      _
    $region27: #{critic_forward.1} parent=1 // pred_check_branch
      %43 = sbr.rel (0) target = $region29
    $region28: #{critic_forward.1} parent=1 // pred_region
      _
    $region29: #{critic_forward.1} parent=1 // pred_fallthru
      _
    // Predicated region
    $region30: #{critic_forward.1} parent=1 // pred_check
      _
    $region31: #{critic_forward.1} parent=1 // pred_check_branch
      %45 = sbr.rel (0) target = $region33
    $region32: #{critic_forward.1} parent=1 // pred_region
      _
    $region33: #{critic_forward.1} parent=1 // pred_fallthru
      _
    // Predicated region
    $region34: #{critic_forward.1} parent=1 // pred_check
      _
    $region35: #{critic_forward.1} parent=1 // pred_check_branch
      %47 = sbr.rel (0) target = $region37
    $region36: #{critic_forward.1} parent=1 // pred_region
      _
    $region37: #{critic_forward.1} parent=1 // pred_fallthru
      _
    // Predicated region
    $region38: #{critic_forward.1} parent=1 // pred_check
      _
    $region39: #{critic_forward.1} parent=1 // pred_check_branch
      %49 = sbr.rel (0) target = $region41
    $region40: #{critic_forward.1} parent=1 // pred_region
      _
    $region41: #{critic_forward.1} parent=1 // pred_fallthru
      _
    // Predicated region
    $region42: #{critic_forward.1} parent=1 // pred_check
      _
    $region43: #{critic_forward.1} parent=1 // pred_check_branch
      %51 = sbr.rel (0) target = $region45
    $region44: #{critic_forward.1} parent=1 // pred_region
      _
    $region45: #{critic_forward.1} parent=1 // pred_fallthru
      _
    // Predicated region
    $region46: #{critic_forward.1} parent=1 // pred_check
      _
    $region47: #{critic_forward.1} parent=1 // pred_check_branch
      %53 = sbr.rel (0) target = $region49
    $region48: #{critic_forward.1} parent=1 // pred_region
      %54 = dma.done [#allocation4], 2048
    $region49: #{critic_forward.1} parent=1 // pred_fallthru
      _
    %v56 = vld [vmem:[%s0] sm:$0xff]
    %v57 = vpack.c.bf16 %v56, %v56
    %v58 = vld [vmem:[%s1] sm:$0xff]
    %v59 = vpack.c.bf16 %v58, %v58
    %v60 = vld [vmem:[%s2] sm:$0xff]
    %v61 = vld [vmem:[%s2 + $0x8] sm:$0xff]
    %v62 = vld [vmem:[%s2 + $0x10] sm:$0xff]
    %v63 = vld [vmem:[%s3] sm:$0xf]
    %v66 = vunpack.c.l.s4 1983009808
    %v67 = vunpack.c.0.s8 %v66
    %v68 = vlaneseq
    %v69 = vshrl.u32 %v68, 7
    %v70 = vsub.s32 %v67, %v69
    %v71 = vrot.slane %v63, %v70
    %v72 = vcombine.high %v71, %v71
    %vm73 = vcmask 31744
    %v75 = vsel %vm73, %v59, 0
    %vm77 = vcmask 1041408
    %v79 = vsel %vm77, %v71, 0
    %v82 = vsel %vm77, %v72, 0
    %84 = vmatprep.subr.bf16.mxu0 0
    %85 = vmatpush1.bf16.msra.mxu0 0
    %86 = vmatprep.subr.bf16.mxu0 0
    %87 = vmatpush1.bf16.msra.mxu0 0
    %88 = vmatprep.subr.bf16.mxu0 0
    %89 = vmatpush1.bf16.msra.mxu0 0
    %90 = vmatprep.subr.bf16.mxu0 0
    %91 = vmatpush1.bf16.msra.mxu0 0
    %92 = vmatprep.subr.bf16.mxu0 0
    %93 = vmatpush1.bf16.msra.mxu0 0
    %94 = vmatprep.subr.bf16.mxu0 0
    %95 = vmatpush1.bf16.msra.mxu0 0
    %96 = vmatprep.subr.bf16.mxu0 0
    %97 = vmatpush1.bf16.msra.mxu0 0
    %98 = vmatprep.subr.bf16.mxu0 %v82
    %99 = vmatpush1.bf16.msra.mxu0 %v79
    %100 = vmatprep.subr.bf16.mxu0 0
    %101 = vmatpush2.bf16.msra.mxu0 0
    %102 = vmatprep.subr.bf16.mxu0 0
    %103 = vmatpush2.bf16.msra.mxu0 0
    %104 = vmatprep.subr.bf16.mxu0 0
    %105 = vmatpush2.bf16.msra.mxu0 0
    %106 = vmatprep.subr.bf16.mxu0 0
    %107 = vmatpush2.bf16.msra.mxu0 0
    %108 = vmatprep.subr.bf16.mxu0 0
    %109 = vmatpush2.bf16.msra.mxu0 0
    %110 = vmatprep.subr.bf16.mxu0 0
    %111 = vmatpush2.bf16.msra.mxu0 0
    %112 = vmatprep.subr.bf16.mxu0 0
    %113 = vmatpush2.bf16.msra.mxu0 0
    %114 = vmatprep.subr.bf16.mxu0 0
    %115 = vmatpush2.bf16.msra.mxu0 0
    %116 = vmatprep.mubr.bf16.mxu0 0
    %117 = vmatmul.mubr.bf16.gmra.mxu0 %v75
    %v118 = vpop.f32.mrf.mxu0
    %v119 = vadd.f32 0.0, %v118
    %v120 = vpop.f32.mrf.mxu0
    %v121 = vadd.f32 0.0, %v120
    %v122 = vpop.f32.mrf.mxu0
    %v123 = vpop.f32.mrf.mxu0
    %124 = vdwg.mxu0
    %v128 = vunpack.c.l.b16 %v60
    %v129 = vunpack.c.h.b16 %v60
    %v130 = vunpack.c.l.b16 %v61
    %v131 = vunpack.c.h.b16 %v61
    %v132 = vunpack.c.l.b16 %v62
    %v133 = vunpack.c.h.b16 %v62
    %v134 = vpack.c.b16 %v130, %v128
    %v135 = vpack.c.b16 %v131, %v129
    %v136 = vpack.c.b16 %v132, %v132
    %v137 = vpack.c.b16 %v133, %v133
    %vm140 = vcmask 195584
    %v142 = vsel %vm140, %v57, 0
    %vm144 = vcmask 1043456
    %v146 = vsel %vm144, %v136, 0
    %v149 = vsel %vm144, %v137, 0
    %151 = vmatprep.subr.bf16.mxu0 0
    %152 = vmatpush1.bf16.msra.mxu0 0
    %153 = vmatprep.subr.bf16.mxu0 0
    %154 = vmatpush1.bf16.msra.mxu0 0
    %155 = vmatprep.subr.bf16.mxu0 0
    %156 = vmatpush1.bf16.msra.mxu0 0
    %157 = vmatprep.subr.bf16.mxu0 0
    %158 = vmatpush1.bf16.msra.mxu0 0
    %159 = vmatprep.subr.bf16.mxu0 0
    %160 = vmatpush1.bf16.msra.mxu0 0
    %161 = vmatprep.subr.bf16.mxu0 0
    %162 = vmatpush1.bf16.msra.mxu0 0
    %163 = vmatprep.subr.bf16.mxu0 %v149
    %164 = vmatpush1.bf16.msra.mxu0 %v146
    %165 = vmatprep.subr.bf16.mxu0 %v135
    %166 = vmatpush1.bf16.msra.mxu0 %v134
    %167 = vmatprep.subr.bf16.mxu0 0
    %168 = vmatpush2.bf16.msra.mxu0 0
    %169 = vmatprep.subr.bf16.mxu0 0
    %170 = vmatpush2.bf16.msra.mxu0 0
    %171 = vmatprep.subr.bf16.mxu0 0
    %172 = vmatpush2.bf16.msra.mxu0 0
    %173 = vmatprep.subr.bf16.mxu0 0
    %174 = vmatpush2.bf16.msra.mxu0 0
    %175 = vmatprep.subr.bf16.mxu0 0
    %176 = vmatpush2.bf16.msra.mxu0 0
    %177 = vmatprep.subr.bf16.mxu0 0
    %178 = vmatpush2.bf16.msra.mxu0 0
    %179 = vmatprep.subr.bf16.mxu0 0
    %180 = vmatpush2.bf16.msra.mxu0 0
    %181 = vmatprep.subr.bf16.mxu0 0
    %182 = vmatpush2.bf16.msra.mxu0 0
    %183 = vmatprep.mubr.bf16.mxu0 0
    %184 = vmatmul.mubr.bf16.gmra.mxu0 %v142
    %v185 = vpop.f32.mrf.mxu0
    %v186 = vadd.f32 %v119, %v185
    %v187 = vpop.f32.mrf.mxu0
    %v188 = vadd.f32 %v121, %v187
    %v189 = vpop.f32.mrf.mxu0
    %v190 = vpop.f32.mrf.mxu0
    %191 = vdwg.mxu0
    %v192 = vld [vmem:[%s4] sm:$0x3]
    %v194 = vlaneseq
    %v195 = vshrl.u32 %v194, 7
    %v196 = vsub.s32 0, %v195
    %v197 = vrot.slane %v192, %v196
    %v198 = vlaneseq
    %v199 = vshrl.u32 %v198, 7
    %v200 = vsub.s32 1, %v199
    %v201 = vrot.slane %v192, %v200
    %v204 = vadd.f32 %v186, %v197
    %v205 = vadd.f32 %v188, %v201
    %vm206 = vcmp.ge.f32.partialorder %v204, 0.0
    %vm207 = vcmp.ge.f32.partialorder %v205, 0.0
    %v208 = vmul.f32 %v204, 0.22916667
    %v209 = vmul.f32 %v205, 0.22916667
    %v210 = vsel %vm206, %v204, %v208
    %v211 = vsel %vm207, %v205, %v209
    %v212 = vpack.c.bf16 %v210, %v210
    %v213 = vpack.c.bf16 %v211, %v211
    %v214 = vld [vmem:[#allocation3] sm:$0xf]
    %v215 = vld [vmem:[#allocation3 + $0x4] sm:$0xf]
    %v216 = vld [vmem:[#allocation3 + $0x8] sm:$0xf]
    %v217 = vld [vmem:[#allocation3 + $0xc] sm:$0xf]
    %v218 = vld [vmem:[#allocation3 + $0x10] sm:$0xf]
    %v219 = vld [vmem:[#allocation3 + $0x14] sm:$0xf]
    %v220 = vld [vmem:[#allocation3 + $0x18] sm:$0xf]
    %v221 = vld [vmem:[#allocation3 + $0x1c] sm:$0xf]
    %v222 = vld [vmem:[#allocation3 + $0x20] sm:$0xf]
    %v223 = vld [vmem:[#allocation3 + $0x24] sm:$0xf]
    %v224 = vld [vmem:[#allocation3 + $0x28] sm:$0xf]
    %v225 = vld [vmem:[#allocation3 + $0x2c] sm:$0xf]
    %v226 = vld [vmem:[#allocation3 + $0x30] sm:$0xf]
    %v227 = vld [vmem:[#allocation3 + $0x34] sm:$0xf]
    %v228 = vld [vmem:[#allocation3 + $0x38] sm:$0xf]
    %v229 = vld [vmem:[#allocation3 + $0x3c] sm:$0xf]
    %v230 = vld [vmem:[#allocation3 + $0x40] sm:$0xf]
    %v231 = vld [vmem:[#allocation3 + $0x44] sm:$0xf]
    %v232 = vld [vmem:[#allocation3 + $0x48] sm:$0xf]
    %v233 = vld [vmem:[#allocation3 + $0x4c] sm:$0xf]
    %v234 = vld [vmem:[#allocation3 + $0x50] sm:$0xf]
    %v235 = vld [vmem:[#allocation3 + $0x54] sm:$0xf]
    %v236 = vld [vmem:[#allocation3 + $0x58] sm:$0xf]
    %v237 = vld [vmem:[#allocation3 + $0x5c] sm:$0xf]
    %v238 = vld [vmem:[#allocation3 + $0x60] sm:$0xf]
    %v239 = vld [vmem:[#allocation3 + $0x64] sm:$0xf]
    %v240 = vld [vmem:[#allocation3 + $0x68] sm:$0xf]
    %v241 = vld [vmem:[#allocation3 + $0x6c] sm:$0xf]
    %v242 = vld [vmem:[#allocation3 + $0x70] sm:$0xf]
    %v243 = vld [vmem:[#allocation3 + $0x74] sm:$0xf]
    %v244 = vld [vmem:[#allocation3 + $0x78] sm:$0xf]
    %v245 = vld [vmem:[#allocation3 + $0x7c] sm:$0xf]
    %v246 = vld [vmem:[%s6] sm:$0x1]
    %v248 = vlaneseq
    %v249 = vshrl.u32 %v248, 7
    %v250 = vsub.s32 0, %v249
    %v251 = vrot.slane %v246, %v250
    %v285 = vunpack.c.l.b16 %v214
    %v286 = vunpack.c.l.b16 %v215
    %v287 = vunpack.c.l.b16 %v216
    %v288 = vunpack.c.l.b16 %v217
    %v289 = vunpack.c.l.b16 %v218
    %v290 = vunpack.c.l.b16 %v219
    %v291 = vunpack.c.l.b16 %v220
    %v292 = vunpack.c.l.b16 %v221
    %v293 = vunpack.c.l.b16 %v222
    %v294 = vunpack.c.l.b16 %v223
    %v295 = vunpack.c.l.b16 %v224
    %v296 = vunpack.c.l.b16 %v225
    %v297 = vunpack.c.l.b16 %v226
    %v298 = vunpack.c.l.b16 %v227
    %v299 = vunpack.c.l.b16 %v228
    %v300 = vunpack.c.l.b16 %v229
    %v301 = vunpack.c.l.b16 %v230
    %v302 = vunpack.c.l.b16 %v231
    %v303 = vunpack.c.l.b16 %v232
    %v304 = vunpack.c.l.b16 %v233
    %v305 = vunpack.c.l.b16 %v234
    %v306 = vunpack.c.l.b16 %v235
    %v307 = vunpack.c.l.b16 %v236
    %v308 = vunpack.c.l.b16 %v237
    %v309 = vunpack.c.l.b16 %v238
    %v310 = vunpack.c.l.b16 %v239
    %v311 = vunpack.c.l.b16 %v240
    %v312 = vunpack.c.l.b16 %v241
    %v313 = vunpack.c.l.b16 %v242
    %v314 = vunpack.c.l.b16 %v243
    %v315 = vunpack.c.l.b16 %v244
    %v316 = vunpack.c.l.b16 %v245
    %v317 = vpack.c.b16 %v286, %v285
    %v318 = vpack.c.b16 %v288, %v287
    %v319 = vpack.c.b16 %v290, %v289
    %v320 = vpack.c.b16 %v292, %v291
    %v321 = vpack.c.b16 %v294, %v293
    %v322 = vpack.c.b16 %v296, %v295
    %v323 = vpack.c.b16 %v298, %v297
    %v324 = vpack.c.b16 %v300, %v299
    %v325 = vpack.c.b16 %v302, %v301
    %v326 = vpack.c.b16 %v304, %v303
    %v327 = vpack.c.b16 %v306, %v305
    %v328 = vpack.c.b16 %v308, %v307
    %v329 = vpack.c.b16 %v310, %v309
    %v330 = vpack.c.b16 %v312, %v311
    %v331 = vpack.c.b16 %v314, %v313
    %v332 = vpack.c.b16 %v316, %v315
    %349 = vmatprep.subr.bf16.mxu0 0
    %350 = vmatpush1.bf16.msra.mxu0 %v324
    %351 = vmatprep.subr.bf16.mxu0 0
    %352 = vmatpush1.bf16.msra.mxu0 %v323
    %353 = vmatprep.subr.bf16.mxu0 0
    %354 = vmatpush1.bf16.msra.mxu0 %v322
    %355 = vmatprep.subr.bf16.mxu0 0
    %356 = vmatpush1.bf16.msra.mxu0 %v321
    %357 = vmatprep.subr.bf16.mxu0 0
    %358 = vmatpush1.bf16.msra.mxu0 %v320
    %359 = vmatprep.subr.bf16.mxu0 0
    %360 = vmatpush1.bf16.msra.mxu0 %v319
    %361 = vmatprep.subr.bf16.mxu0 0
    %362 = vmatpush1.bf16.msra.mxu0 %v318
    %363 = vmatprep.subr.bf16.mxu0 0
    %364 = vmatpush1.bf16.msra.mxu0 %v317
    %365 = vmatprep.subr.bf16.mxu0 0
    %366 = vmatpush2.bf16.msra.mxu0 %v332
    %367 = vmatprep.subr.bf16.mxu0 0
    %368 = vmatpush2.bf16.msra.mxu0 %v331
    %369 = vmatprep.subr.bf16.mxu0 0
    %370 = vmatpush2.bf16.msra.mxu0 %v330
    %371 = vmatprep.subr.bf16.mxu0 0
    %372 = vmatpush2.bf16.msra.mxu0 %v329
    %373 = vmatprep.subr.bf16.mxu0 0
    %374 = vmatpush2.bf16.msra.mxu0 %v328
    %375 = vmatprep.subr.bf16.mxu0 0
    %376 = vmatpush2.bf16.msra.mxu0 %v327
    %377 = vmatprep.subr.bf16.mxu0 0
    %378 = vmatpush2.bf16.msra.mxu0 %v326
    %379 = vmatprep.subr.bf16.mxu0 0
    %380 = vmatpush2.bf16.msra.mxu0 %v325
    %381 = vmatprep.mubr.bf16.mxu0 %v213
    %382 = vmatmul.mubr.bf16.gmra.mxu0 %v212
    %v383 = vpop.f32.mrf.mxu0
    %v384 = vadd.f32 %v251, %v383
    %v385 = vpop.f32.mrf.mxu0
    %v386 = vpop.f32.mrf.mxu0
    %v387 = vpop.f32.mrf.mxu0
    %388 = vdwg.mxu0
    %vm389 = vcmp.ge.f32.partialorder %v384, 0.0
    %v390 = vmul.f32 %v384, 0.22916667
    %v391 = vsel %vm389, %v384, %v390
    %v392 = vpack.c.bf16 %v391, %v391
    %v393 = vld [vmem:[%s7] sm:$0xf]
    %v394 = vld [vmem:[%s7 + $0x4] sm:$0xf]
    %v395 = vld [vmem:[%s7 + $0x8] sm:$0xf]
    %v396 = vld [vmem:[%s7 + $0xc] sm:$0xf]
    %v397 = vld [vmem:[%s7 + $0x10] sm:$0xf]
    %v398 = vld [vmem:[%s7 + $0x14] sm:$0xf]
    %v399 = vld [vmem:[%s7 + $0x18] sm:$0xf]
    %v400 = vld [vmem:[%s7 + $0x1c] sm:$0xf]
    %v401 = vld [vmem:[%s7 + $0x20] sm:$0xf]
    %v402 = vld [vmem:[%s7 + $0x24] sm:$0xf]
    %v403 = vld [vmem:[%s7 + $0x28] sm:$0xf]
    %v404 = vld [vmem:[%s7 + $0x2c] sm:$0xf]
    %v405 = vld [vmem:[%s7 + $0x30] sm:$0xf]
    %v406 = vld [vmem:[%s7 + $0x34] sm:$0xf]
    %v407 = vld [vmem:[%s7 + $0x38] sm:$0xf]
    %v408 = vld [vmem:[%s7 + $0x3c] sm:$0xf]
    %v409 = vld [vmem:[%s8] sm:$0x1]
    %v411 = vlaneseq
    %v412 = vshrl.u32 %v411, 7
    %v413 = vsub.s32 0, %v412
    %v414 = vrot.slane %v409, %v413
    %v432 = vunpack.c.l.b16 %v393
    %v433 = vunpack.c.l.b16 %v394
    %v434 = vunpack.c.l.b16 %v395
    %v435 = vunpack.c.l.b16 %v396
    %v436 = vunpack.c.l.b16 %v397
    %v437 = vunpack.c.l.b16 %v398
    %v438 = vunpack.c.l.b16 %v399
    %v439 = vunpack.c.l.b16 %v400
    %v440 = vunpack.c.l.b16 %v401
    %v441 = vunpack.c.l.b16 %v402
    %v442 = vunpack.c.l.b16 %v403
    %v443 = vunpack.c.l.b16 %v404
    %v444 = vunpack.c.l.b16 %v405
    %v445 = vunpack.c.l.b16 %v406
    %v446 = vunpack.c.l.b16 %v407
    %v447 = vunpack.c.l.b16 %v408
    %v448 = vpack.c.b16 %v433, %v432
    %v449 = vpack.c.b16 %v435, %v434
    %v450 = vpack.c.b16 %v437, %v436
    %v451 = vpack.c.b16 %v439, %v438
    %v452 = vpack.c.b16 %v441, %v440
    %v453 = vpack.c.b16 %v443, %v442
    %v454 = vpack.c.b16 %v445, %v444
    %v455 = vpack.c.b16 %v447, %v446
    %464 = vmatprep.subr.bf16.mxu0 0
    %465 = vmatpush1.bf16.msra.mxu0 %v455
    %466 = vmatprep.subr.bf16.mxu0 0
    %467 = vmatpush1.bf16.msra.mxu0 %v454
    %468 = vmatprep.subr.bf16.mxu0 0
    %469 = vmatpush1.bf16.msra.mxu0 %v453
    %470 = vmatprep.subr.bf16.mxu0 0
    %471 = vmatpush1.bf16.msra.mxu0 %v452
    %472 = vmatprep.subr.bf16.mxu0 0
    %473 = vmatpush1.bf16.msra.mxu0 %v451
    %474 = vmatprep.subr.bf16.mxu0 0
    %475 = vmatpush1.bf16.msra.mxu0 %v450
    %476 = vmatprep.subr.bf16.mxu0 0
    %477 = vmatpush1.bf16.msra.mxu0 %v449
    %478 = vmatprep.subr.bf16.mxu0 0
    %479 = vmatpush1.bf16.msra.mxu0 %v448
    %480 = vmatprep.subr.bf16.mxu0 0
    %481 = vmatpush2.bf16.msra.mxu0 0
    %482 = vmatprep.subr.bf16.mxu0 0
    %483 = vmatpush2.bf16.msra.mxu0 0
    %484 = vmatprep.subr.bf16.mxu0 0
    %485 = vmatpush2.bf16.msra.mxu0 0
    %486 = vmatprep.subr.bf16.mxu0 0
    %487 = vmatpush2.bf16.msra.mxu0 0
    %488 = vmatprep.subr.bf16.mxu0 0
    %489 = vmatpush2.bf16.msra.mxu0 0
    %490 = vmatprep.subr.bf16.mxu0 0
    %491 = vmatpush2.bf16.msra.mxu0 0
    %492 = vmatprep.subr.bf16.mxu0 0
    %493 = vmatpush2.bf16.msra.mxu0 0
    %494 = vmatprep.subr.bf16.mxu0 0
    %495 = vmatpush2.bf16.msra.mxu0 0
    %496 = vmatprep.mubr.bf16.mxu0 0
    %497 = vmatmul.mubr.bf16.gmra.mxu0 %v392
    %v498 = vpop.f32.mrf.mxu0
    %v499 = vadd.f32 %v414, %v498
    %v500 = vpop.f32.mrf.mxu0
    %v501 = vpop.f32.mrf.mxu0
    %v502 = vpop.f32.mrf.mxu0
    %503 = vdwg.mxu0
    %vm504 = vcmp.ge.f32.partialorder %v499, 0.0
    %v505 = vmul.f32 %v499, 0.22916667
    %v506 = vsel %vm504, %v499, %v505
    %v507 = vld [vmem:[%s9] sm:$0x1]
    %v508 = vld [vmem:[#allocation2] sm:$0x1]
    %510 = vset.pattern.permute.xlu0 0
    %511 = vperm.xlu0 %510, %v508
    %v512 = vpop.permute.xlu0 %511
    %v514 = vlaneseq
    %v515 = vshrl.u32 %v514, 7
    %v516 = vsub.s32 0, %v515
    %v517 = vrot.slane %v512, %v516
    %vm518 = vcmask 523264
    %v520 = vsel %vm518, %v507, 0
    %v523 = vsel %vm518, %v506, 0
    %525 = vmatprep.subr.mxu0 0.0
    %526 = vmatpush1.xpose.msra.mxu0 0.0
    %527 = vmatprep.subr.mxu0 0.0
    %528 = vmatpush1.xpose.msra.mxu0 0.0
    %529 = vmatprep.subr.mxu0 0.0
    %530 = vmatpush1.xpose.msra.mxu0 0.0
    %531 = vmatprep.subr.mxu0 0.0
    %532 = vmatpush1.xpose.msra.mxu0 0.0
    %533 = vmatprep.subr.mxu0 0.0
    %534 = vmatpush1.xpose.msra.mxu0 0.0
    %535 = vmatprep.subr.mxu0 0.0
    %536 = vmatpush1.xpose.msra.mxu0 0.0
    %537 = vmatprep.subr.mxu0 0.0
    %538 = vmatpush1.xpose.msra.mxu0 0.0
    %539 = vmatprep.subr.mxu0 0.0
    %540 = vmatpush1.xpose.msra.mxu0 0.0
    %541 = vmatprep.subr.mxu0 0.0
    %542 = vmatpush1.xpose.msra.mxu0 0.0
    %543 = vmatprep.subr.mxu0 0.0
    %544 = vmatpush1.xpose.msra.mxu0 0.0
    %545 = vmatprep.subr.mxu0 0.0
    %546 = vmatpush1.xpose.msra.mxu0 0.0
    %547 = vmatprep.subr.mxu0 0.0
    %548 = vmatpush1.xpose.msra.mxu0 0.0
    %549 = vmatprep.subr.mxu0 0.0
    %550 = vmatpush1.xpose.msra.mxu0 0.0
    %551 = vmatprep.subr.mxu0 0.0
    %552 = vmatpush1.xpose.msra.mxu0 0.0
    %553 = vmatprep.subr.mxu0 0.0
    %554 = vmatpush1.xpose.msra.mxu0 0.0
    %555 = vmatprep.subr.mxu0 0.0
    %556 = vmatpush1.xpose.msra.mxu0 %v523
    %557 = vmatprep.subr.mxu0 0.0
    %558 = vmatpush2.xpose.msra.mxu0 0.0
    %559 = vmatprep.subr.mxu0 0.0
    %560 = vmatpush2.xpose.msra.mxu0 0.0
    %561 = vmatprep.subr.mxu0 0.0
    %562 = vmatpush2.xpose.msra.mxu0 0.0
    %563 = vmatprep.subr.mxu0 0.0
    %564 = vmatpush2.xpose.msra.mxu0 0.0
    %565 = vmatprep.subr.mxu0 0.0
    %566 = vmatpush2.xpose.msra.mxu0 0.0
    %567 = vmatprep.subr.mxu0 0.0
    %568 = vmatpush2.xpose.msra.mxu0 0.0
    %569 = vmatprep.subr.mxu0 0.0
    %570 = vmatpush2.xpose.msra.mxu0 0.0
    %571 = vmatprep.subr.mxu0 0.0
    %572 = vmatpush2.xpose.msra.mxu0 0.0
    %573 = vmatprep.subr.mxu0 0.0
    %574 = vmatpush2.xpose.msra.mxu0 0.0
    %575 = vmatprep.subr.mxu0 0.0
    %576 = vmatpush2.xpose.msra.mxu0 0.0
    %577 = vmatprep.subr.mxu0 0.0
    %578 = vmatpush2.xpose.msra.mxu0 0.0
    %579 = vmatprep.subr.mxu0 0.0
    %580 = vmatpush2.xpose.msra.mxu0 0.0
    %581 = vmatprep.subr.mxu0 0.0
    %582 = vmatpush2.xpose.msra.mxu0 0.0
    %583 = vmatprep.subr.mxu0 0.0
    %584 = vmatpush2.xpose.msra.mxu0 0.0
    %585 = vmatprep.subr.mxu0 0.0
    %586 = vmatpush2.xpose.msra.mxu0 0.0
    %587 = vmatprep.subr.mxu0 0.0
    %588 = vmatpush2.xpose.msra.mxu0 0.0
    %589 = vmatprep.mubr.f32.mxu0 0.0
    %590 = vmatmul.mubr.f32.gmra.mxu0 %v520
    %v591 = vpop.f32.mrf.mxu0
    %v592 = vadd.f32 %v517, %v591
    %v593 = vpop.f32.mrf.mxu0
    %594 = vdwg.mxu0
    %vm595 = vcmask 57344
    %596 = vst.msk [vmem:[#allocation6] sm:$0x1] %vm595, %v592
    // Predicated region
    $region50: #{critic_forward.1} parent=1 // pred_check
      _
    $region51: #{critic_forward.1} parent=1 // pred_check_branch
      %598 = sbr.rel (0) target = $region53
    $region52: #{critic_forward.1} parent=1 // pred_region
      %s600 = ssub.s32 16, 16
      %601 = vsyncadd [#allocation5], %s600
      %s603 = sshll.u32 [#allocation6], 4
      %s604 = int_to_ptr.vmem [resolvable:$true] %s603
      %606 = dma.vmem_to_hbm [thread:$0]  %s604, 16, %s11, [#allocation5]
    $region53: #{critic_forward.1} parent=1 // pred_fallthru
      _
    // Predicated region
    $region54: #{critic_forward.1} parent=1 // pred_check
      _
    $region55: #{critic_forward.1} parent=1 // pred_check_branch
      %608 = sbr.rel (0) target = $region57
    $region56: #{critic_forward.1} parent=1 // pred_region
      %609 = dma.done [#allocation5], 16
    $region57: #{critic_forward.1} parent=1 // pred_fallthru
      _
    %610 = vsyncpa [#allocation4], 1
    %611 = vsyncpa [#allocation5], 1

</llo_original>
